<compile_context>
chip_gen: v6e
topology: v6e:2x2x1
jax: 0.10.0
libtpu: 0.0.40
codegen_flags: <defaults>
</compile_context>

<pallas_src>
import jax
import jax.numpy as jnp
from jax.experimental import pallas as pl
from jax.experimental.pallas import tpu as pltpu


def _round_up(x, m):
    return ((x + m - 1) // m) * m


def _choose_tk(K, k_split):
    """Contraction tile: K itself when small; otherwise the largest divisor of K
    that is a multiple of 128 and <= min(1024, k_split); falls back to K."""
    if K <= k_split:
        return K
    cand = (min(1024, k_split) // 128) * 128
    while cand >= 128:
        if K % cand == 0:
            return cand
        cand -= 128
    return K  # no lane-aligned divisor: keep K untiled (correctness over VMEM)


def _simple_kernel(x_ref, w_ref, b_ref, o_ref):
    # Single K block: dot + bias in one shot, f32 accumulation on the MXU.
    x = x_ref[...].astype(w_ref.dtype)        # in-kernel bf16 cast (no extra HBM pass)
    acc = jnp.dot(x, w_ref[...], preferred_element_type=jnp.float32)
    o_ref[...] = (acc + b_ref[...]).astype(o_ref.dtype)


def _make_acc_kernel(k_axis):
    # K-tiled variant: f32 VMEM accumulator, init at k == 0, bias + store at last k.
    def kernel(x_ref, w_ref, b_ref, o_ref, acc_ref):
        @pl.when(pl.program_id(k_axis) == 0)
        def _():
            acc_ref[...] = jnp.zeros_like(acc_ref)

        x = x_ref[...].astype(w_ref.dtype)
        acc_ref[...] += jnp.dot(x, w_ref[...], preferred_element_type=jnp.float32)

        @pl.when(pl.program_id(k_axis) == pl.num_programs(k_axis) - 1)
        def _():
            o_ref[...] = (acc_ref[...] + b_ref[...]).astype(o_ref.dtype)

    return kernel


def time_distributed_linear(x, weight, bias, *, tm=None, tn=256, k_split=2048,
                            use_bf16=True, out_dtype=None):
    """TimeDistributed(Linear) forward.

    x:      (B, T, F_in)
    weight: (F_in, F_out)   -- already transposed relative to PyTorch's (out, in)
    bias:   (F_out,)
    returns (B, T, F_out)
    """
    B, T, K = x.shape
    N = weight.shape[1]
    M = B * T
    out_dtype = x.dtype if out_dtype is None else jnp.dtype(out_dtype)
    compute_dtype = jnp.bfloat16 if use_bf16 else x.dtype

    # Per-generation VMEM budget (v5e/v6e: 128 MiB, v7x: 64 MiB); keep ~20%
    # headroom for Mosaic internal scratch / semaphores.
    try:
        vmem_cap = int(pltpu.get_tpu_info().vmem_capacity_bytes)
    except Exception:
        vmem_cap = 64 * 1024 * 1024          # assume the smallest (v7x) if unknown
    vmem_budget = int(0.8 * vmem_cap)

    if tm is None:
        tm = 512 if vmem_cap >= 96 * 1024 * 1024 else 256   # bigger row tiles on v5e/v6e

    # Output-feature tiling: lane-dense (multiple of 128) so stores are unmasked vst.
    tn_eff = _round_up(min(tn, _round_up(N, 128)), 128)
    N_pad = _round_up(N, tn_eff)
    nj = N_pad // tn_eff

    # Contraction tiling (only when K is big enough to threaten VMEM).
    tk_eff = _choose_tk(K, k_split)
    nk = K // tk_eff

    # Row tiling: multiple of 8 (sublanes).  x is NOT padded along M -- the partial
    # last row block's output writes are masked, so the tail costs no extra DMA.
    tm_eff = _round_up(min(tm, _round_up(M, 8)), 8)

    # Only pre-cast x (a separate HBM pass) when it will be re-read many times;
    # otherwise cast it in-kernel, which halves x-side HBM traffic.
    precast_x = use_bf16 and (x.dtype != compute_dtype) and nj >= 4
    x_pass_dtype = compute_dtype if precast_x else x.dtype
    ix = jnp.dtype(x_pass_dtype).itemsize
    iw = jnp.dtype(compute_dtype).itemsize
    io = jnp.dtype(out_dtype).itemsize

    def _vmem_need(tm_e):
        n = 2 * (tm_e * tk_eff * ix          # x tile (double-buffered)
                 + tk_eff * tn_eff * iw      # weight tile
                 + tn_eff * 4                # bias tile
                 + tm_e * tn_eff * io)       # output tile
        if nk > 1:
            n += tm_e * tn_eff * 4           # f32 accumulator scratch
        return n

    # Shrink the row tile if the tiles would not fit the per-core VMEM budget.
    while tm_eff > 8 and _vmem_need(tm_eff) > vmem_budget:
        tm_eff = max(8, _round_up(tm_eff // 2, 8))

    ni = pl.cdiv(M, tm_eff)

    # --- TimeDistributed.__multi_time: (B, T, F_in) -> (B*T, F_in) (free reshape) ---
    x2 = x.reshape(M, K)
    if precast_x:
        x2 = x2.astype(compute_dtype)
    w2 = weight.astype(compute_dtype)
    b2 = bias.astype(jnp.float32).reshape(1, N)
    if N_pad != N:                           # tiny parameter padding only; x never padded
        w2 = jnp.pad(w2, ((0, 0), (0, N_pad - N)))
        b2 = jnp.pad(b2, ((0, 0), (0, N_pad - N)))

    # Grid layout.  With nj == 1 (common small-F_out case) the column axis is dropped
    # so the single "parallel" axis is the row axis ni -> that is what megacore shards
    # on v7x.  When K is tiled it is innermost and "arbitrary" (resident accumulator).
    if nj == 1:
        if nk == 1:
            grid = (ni,)
            x_map = lambda i: (i, 0)
            w_map = lambda i: (0, 0)
            b_map = lambda i: (0, 0)
            o_map = lambda i: (i, 0)
            semantics = ("parallel",)
        else:
            grid = (ni, nk)
            x_map = lambda i, k: (i, k)
            w_map = lambda i, k: (k, 0)
            b_map = lambda i, k: (0, 0)
            o_map = lambda i, k: (i, 0)
            semantics = ("parallel", "arbitrary")
    else:
        if nk == 1:
            grid = (nj, ni)                  # weight/bias tile resident over the row sweep
            x_map = lambda j, i: (i, 0)
            w_map = lambda j, i: (0, j)
            b_map = lambda j, i: (0, j)
            o_map = lambda j, i: (i, j)
            semantics = ("parallel", "parallel")
        else:
            grid = (nj, ni, nk)
            x_map = lambda j, i, k: (i, k)
            w_map = lambda j, i, k: (k, j)
            b_map = lambda j, i, k: (0, j)
            o_map = lambda j, i, k: (i, j)
            semantics = ("parallel", "parallel", "arbitrary")

    if nk > 1:
        kernel = _make_acc_kernel(len(grid) - 1)
        scratch_shapes = [pltpu.VMEM((tm_eff, tn_eff), jnp.float32)]
    else:
        kernel = _simple_kernel
        scratch_shapes = []

    # DMA/flop estimate for XLA's scheduler: x is re-read once per column tile;
    # the weight is re-read once per row tile when K is tiled.
    x_reads = nj
    w_reads = ni if nk > 1 else 1
    cost = pl.CostEstimate(
        flops=2 * M * K * N_pad,
        transcendentals=0,
        bytes_accessed=int(x_reads * M * K * ix + w_reads * K * N_pad * iw
                           + N_pad * 4 + M * N_pad * io),
    )

    vmem_limit = int(min(vmem_budget,
                         max(int(1.5 * _vmem_need(tm_eff)), 8 * 1024 * 1024)))

    out2 = pl.pallas_call(
        kernel,
        out_shape=jax.ShapeDtypeStruct((M, N_pad), out_dtype),
        grid_spec=pltpu.PrefetchScalarGridSpec(
            num_scalar_prefetch=0,
            grid=grid,
            in_specs=[
                pl.BlockSpec((tm_eff, tk_eff), x_map),   # rows of flattened input
                pl.BlockSpec((tk_eff, tn_eff), w_map),   # weight tile
                pl.BlockSpec((1, tn_eff), b_map),        # bias tile (f32)
            ],
            out_specs=pl.BlockSpec((tm_eff, tn_eff), o_map),
            scratch_shapes=scratch_shapes,
        ),
        compiler_params=pltpu.CompilerParams(
            dimension_semantics=semantics,
            vmem_limit_bytes=vmem_limit,
        ),
        cost_estimate=cost,
    )(x2, w2, b2)

    # Strip feature padding, then __dist_time: (B*T, F_out) -> (B, T, F_out).
    if N_pad != N:
        out2 = out2[:, :N]
    return out2.reshape(B, T, N)


if __name__ == "__main__":
    k1, k2, k3, k4, k5, k6 = jax.random.split(jax.random.PRNGKey(0), 6)

    # --- Test 1: demo shapes (batch=2, seq=8, hidden in/out=32) -> nj == nk == 1 path ---
    B, T, F_IN, F_OUT = 2, 8, 32, 32
    x1 = jax.random.normal(k1, (B, T, F_IN), dtype=jnp.float32)
    bound = 1.0 / (F_IN ** 0.5)   # nn.Linear uniform(-1/sqrt(in), 1/sqrt(in)) init
    w1 = jax.random.uniform(k2, (F_IN, F_OUT), jnp.float32, -bound, bound)
    b1 = jax.random.uniform(k3, (F_OUT,), jnp.float32, -bound, bound)

    y1 = jax.block_until_ready(time_distributed_linear(x1, w1, b1))

    ref1_f32 = (x1.reshape(B * T, F_IN) @ w1 + b1).reshape(B, T, F_OUT)
    ref1_bf16 = (x1.reshape(B * T, F_IN).astype(jnp.bfloat16).astype(jnp.float32)
                 @ w1.astype(jnp.bfloat16).astype(jnp.float32) + b1).reshape(B, T, F_OUT)
    assert y1.shape == (B, T, F_OUT)
    assert jnp.allclose(y1, ref1_bf16, atol=2e-3, rtol=2e-3)
    assert jnp.allclose(y1, ref1_f32, atol=2e-2, rtol=2e-2)

    # --- Test 2: exercises K tiling, nj > 1, and the masked partial row tile ---
    B2, T2, F_IN2, F_OUT2 = 3, 7, 1024, 160      # M = 21 (partial row block with tm=8)
    xb = jax.random.normal(k4, (B2, T2, F_IN2), dtype=jnp.float32)
    bound2 = 1.0 / (F_IN2 ** 0.5)
    wb = jax.random.uniform(k5, (F_IN2, F_OUT2), jnp.float32, -bound2, bound2)
    bb = jax.random.uniform(k6, (F_OUT2,), jnp.float32, -bound2, bound2)

    y2 = jax.block_until_ready(
        time_distributed_linear(xb, wb, bb, tm=8, tn=128, k_split=512))

    xbf = xb.reshape(B2 * T2, F_IN2)
    ref2_f32 = (xbf @ wb + bb).reshape(B2, T2, F_OUT2)
    ref2_bf16 = (xbf.astype(jnp.bfloat16).astype(jnp.float32)
                 @ wb.astype(jnp.bfloat16).astype(jnp.float32) + bb).reshape(B2, T2, F_OUT2)
    assert y2.shape == (B2, T2, F_OUT2)
    assert jnp.allclose(y2, ref2_bf16, atol=2e-3, rtol=2e-3)
    assert jnp.allclose(y2, ref2_f32, atol=5e-2, rtol=5e-2)

    print("KERNEL_OK")
</pallas_src>

<mosaic_0001>
module attributes {stable_mosaic.version = 11 : i64} {
  func.func @_simple_kernel(%arg0: i32, %arg1: memref<16x32xf32, #tpu.memory_space<vmem>>, %arg2: memref<32x128xbf16, #tpu.memory_space<vmem>>, %arg3: memref<1x128xf32, #tpu.memory_space<vmem>>, %arg4: memref<16x128xf32, #tpu.memory_space<vmem>>) attributes {dimension_semantics = [#tpu.dimension_semantics<parallel>], iteration_bounds = array<i64: 1>, scalar_prefetch = 0 : i64, scratch_operands = 0 : i64, tpu.core_type = #tpu.core_type<tc>, window_params = [{transform_indices = @transform_0, window_bounds = array<i64: 16, 32>}, {pipeline_mode = #tpu.pipeline_mode<synchronous>, transform_indices = @transform_1, window_bounds = array<i64: 32, 128>}, {pipeline_mode = #tpu.pipeline_mode<synchronous>, transform_indices = @transform_2, window_bounds = array<i64: 1, 128>}, {transform_indices = @transform_3, window_bounds = array<i64: 16, 128>}]} {
    %c0 = arith.constant 0 : index
    %c0_0 = arith.constant 0 : index
    %0 = vector.load %arg1[%c0, %c0_0] : memref<16x32xf32, #tpu.memory_space<vmem>>, vector<16x32xf32>
    %1 = arith.truncf %0 : vector<16x32xf32> to vector<16x32xbf16>
    %c0_1 = arith.constant 0 : index
    %c0_2 = arith.constant 0 : index
    %2 = vector.load %arg2[%c0_1, %c0_2] : memref<32x128xbf16, #tpu.memory_space<vmem>>, vector<32x128xbf16>
    %cst = arith.constant dense<0.000000e+00> : vector<16x128xf32>
    %3 = tpu.matmul %1, %2, %cst {dimension_numbers = #tpu.dot_dimension_numbers<[1], [0], [0], [1], [0, 0, 1, 1], [], []>} : vector<16x32xbf16>, vector<32x128xbf16>, vector<16x128xf32> -> vector<16x128xf32>
    %c0_3 = arith.constant 0 : index
    %c0_4 = arith.constant 0 : index
    %4 = vector.load %arg3[%c0_3, %c0_4] : memref<1x128xf32, #tpu.memory_space<vmem>>, vector<1x128xf32>
    %5 = vector.broadcast %4 : vector<1x128xf32> to vector<16x128xf32>
    %6 = arith.addf %3, %5 : vector<16x128xf32>
    %c0_5 = arith.constant 0 : index
    %c0_6 = arith.constant 0 : index
    %7 = vector.load %arg4[%c0_5, %c0_6] : memref<16x128xf32, #tpu.memory_space<vmem>>, vector<16x128xf32>
    tpu.vector_store %arg4[%c0_5, %c0_6], %6 {strides = array<i32>} : memref<16x128xf32, #tpu.memory_space<vmem>>, vector<16x128xf32>,
    return
  }
  func.func @transform_0(%arg0: i32) -> (i32, i32) {
    %c0_i32 = arith.constant 0 : i32
    %c0_i32_0 = arith.constant 0 : i32
    return %arg0, %c0_i32 : i32, i32
  }
  func.func @transform_1(%arg0: i32) -> (i32, i32) {
    %c0_i32 = arith.constant 0 : i32
    %c0_i32_0 = arith.constant 0 : i32
    %c0_i32_1 = arith.constant 0 : i32
    return %c0_i32, %c0_i32_0 : i32, i32
  }
  func.func @transform_2(%arg0: i32) -> (i32, i32) {
    %c0_i32 = arith.constant 0 : i32
    %c0_i32_0 = arith.constant 0 : i32
    %c0_i32_1 = arith.constant 0 : i32
    return %c0_i32, %c0_i32_0 : i32, i32
  }
  func.func @transform_3(%arg0: i32) -> (i32, i32) {
    %c0_i32 = arith.constant 0 : i32
    %c0_i32_0 = arith.constant 0 : i32
    return %arg0, %c0_i32 : i32, i32
  }
}

</mosaic_0001>

<llo_original>
// kernel: tpu_custom_call.1
$region0: #{tpu_custom_call.1}
  #allocation0 [shape = 'u32[]', space=smem, size = 0x4, offset = 0x4, fixed_abs, tag = 'smem constant byte address 0x4 - core index']
  #allocation1 [shape = 'u32[144,128]{1,0:T(1,128)}', space=vmem, size = 0x12000, scoped, tag = 'internal scratch']
  %s0 = inlined_call_operand.hbm [shape: f32[16,32], index: 0, kind: input, shape index: {}]
  %s1 = inlined_call_operand.hbm [shape: bf16[32,128], index: 1, kind: input, shape index: {}]
  %s2 = inlined_call_operand.vmem [shape: f32[1,128], index: 2, kind: input, shape index: {}]
  %s3 = inlined_call_operand.hbm [shape: f32[16,128], index: 3, kind: output, shape index: {}]
  %s4 = sld [smem:[#allocation0]]
  $region30: #{tpu_custom_call.1} parent=0
    _
  %s6 = ssub.s32 1, %s4
  %s7 = scalar_select 0, %s6, %s4
  $region1: #{tpu_custom_call.1} parent=0
    #allocation2 [shape = 'u8[8192]{0}', space=vmem, size = 0x2000, scoped, tag = 'input window, operand 0, single buffered']
    #allocation3 [shape = 's32[1]{0}', space=sflag, size = 0x4, scoped, tag = 'scoped memory for tpu_custom_call.1']
    #allocation4 [shape = 's32[1]{0}', space=sflag, size = 0x4, scoped, tag = 'scoped memory for tpu_custom_call.1']
    #allocation5 [shape = 'u8[8192]{0}', space=vmem, size = 0x2000, scoped, tag = 'input window, operand 1, single buffered']
    #allocation6 [shape = 's32[1]{0}', space=sflag, size = 0x4, scoped, tag = 'scoped memory for tpu_custom_call.1']
    #allocation7 [shape = 'u8[8192]{0}', space=vmem, size = 0x2000, scoped, tag = 'output window, operand 0, single buffered']
    %8 = vsyncpa [#allocation3], 0
    %9 = vsyncpa [#allocation6], 0
    %10 = vsyncpa [#allocation4], 0
    // Predicated region
    $region2: #{tpu_custom_call.1} parent=1 // pred_check
      _
    $region3: #{tpu_custom_call.1} parent=1 // pred_check_branch
      %12 = sbr.rel (0) target = $region5
    $region4: #{tpu_custom_call.1} parent=1 // pred_region
      %s14 = ssub.s32 256, 256
      %15 = vsyncadd [#allocation3], %s14
      %s16 = sshll.u32 [#allocation2], 4
      %s17 = int_to_ptr.vmem [resolvable:$true] %s16
      %22 = dma.hbm_to_vmem [thread:$0]  %s0, 256, %s17, [#allocation3], 128, 128, 8
    $region5: #{tpu_custom_call.1} parent=1 // pred_fallthru
      _
    // Predicated region
    $region6: #{tpu_custom_call.1} parent=1 // pred_check
      _
    $region7: #{tpu_custom_call.1} parent=1 // pred_check_branch
      %24 = sbr.rel (0) target = $region9
    $region8: #{tpu_custom_call.1} parent=1 // pred_region
      %s26 = ssub.s32 256, 256
      %27 = vsyncadd [#allocation6], %s26
      %s28 = sshll.u32 [#allocation5], 4
      %s29 = int_to_ptr.vmem [resolvable:$true] %s28
      %34 = dma.hbm_to_vmem [thread:$0]  %s1, 256, %s29, [#allocation6], 64, 64, 4
    $region9: #{tpu_custom_call.1} parent=1 // pred_fallthru
      _
    // Predicated region
    $region10: #{tpu_custom_call.1} parent=1 // pred_check
      _
    $region11: #{tpu_custom_call.1} parent=1 // pred_check_branch
      %36 = sbr.rel (0) target = $region13
    $region12: #{tpu_custom_call.1} parent=1 // pred_region
      _
    $region13: #{tpu_custom_call.1} parent=1 // pred_fallthru
      _
    // Predicated region
    $region14: #{tpu_custom_call.1} parent=1 // pred_check
      _
    $region15: #{tpu_custom_call.1} parent=1 // pred_check_branch
      %38 = sbr.rel (0) target = $region17
    $region16: #{tpu_custom_call.1} parent=1 // pred_region
      %39 = dma.done [#allocation3], 256
    $region17: #{tpu_custom_call.1} parent=1 // pred_fallthru
      _
    // Predicated region
    $region18: #{tpu_custom_call.1} parent=1 // pred_check
      _
    $region19: #{tpu_custom_call.1} parent=1 // pred_check_branch
      %41 = sbr.rel (0) target = $region21
    $region20: #{tpu_custom_call.1} parent=1 // pred_region
      %42 = dma.done [#allocation6], 256
    $region21: #{tpu_custom_call.1} parent=1 // pred_fallthru
      _
    %v44 = vld [vmem:[#allocation2] sm:$0xff]
    %v45 = vld [vmem:[#allocation2 + $0x8] sm:$0xff]
    %v46 = vpack.c.bf16 %v45, %v44
    %v47 = vld [vmem:[#allocation5] sm:$0xf]
    %v48 = vld [vmem:[#allocation5 + $0x4] sm:$0xf]
    %v49 = vld [vmem:[#allocation5 + $0x8] sm:$0xf]
    %v50 = vld [vmem:[#allocation5 + $0xc] sm:$0xf]
    %v51 = vld [vmem:[%s2] sm:$0x1]
    %v53 = vlaneseq
    %v54 = vshrl.u32 %v53, 7
    %v55 = vsub.s32 0, %v54
    %v56 = vrot.slane %v51, %v55
    %v62 = vunpack.c.l.b16 %v47
    %v63 = vunpack.c.l.b16 %v48
    %v64 = vunpack.c.l.b16 %v49
    %v65 = vunpack.c.l.b16 %v50
    %v66 = vpack.c.b16 %v63, %v62
    %v67 = vpack.c.b16 %v65, %v64
    %vm70 = vcmask 261120
    %v72 = vsel %vm70, %v46, 0
    %74 = vmatprep.subr.bf16.mxu0 0
    %75 = vmatpush1.bf16.msra.mxu0 0
    %76 = vmatprep.subr.bf16.mxu0 0
    %77 = vmatpush1.bf16.msra.mxu0 0
    %78 = vmatprep.subr.bf16.mxu0 0
    %79 = vmatpush1.bf16.msra.mxu0 0
    %80 = vmatprep.subr.bf16.mxu0 0
    %81 = vmatpush1.bf16.msra.mxu0 0
    %82 = vmatprep.subr.bf16.mxu0 0
    %83 = vmatpush1.bf16.msra.mxu0 0
    %84 = vmatprep.subr.bf16.mxu0 0
    %85 = vmatpush1.bf16.msra.mxu0 0
    %86 = vmatprep.subr.bf16.mxu0 0
    %87 = vmatpush1.bf16.msra.mxu0 %v67
    %88 = vmatprep.subr.bf16.mxu0 0
    %89 = vmatpush1.bf16.msra.mxu0 %v66
    %90 = vmatprep.subr.bf16.mxu0 0
    %91 = vmatpush2.bf16.msra.mxu0 0
    %92 = vmatprep.subr.bf16.mxu0 0
    %93 = vmatpush2.bf16.msra.mxu0 0
    %94 = vmatprep.subr.bf16.mxu0 0
    %95 = vmatpush2.bf16.msra.mxu0 0
    %96 = vmatprep.subr.bf16.mxu0 0
    %97 = vmatpush2.bf16.msra.mxu0 0
    %98 = vmatprep.subr.bf16.mxu0 0
    %99 = vmatpush2.bf16.msra.mxu0 0
    %100 = vmatprep.subr.bf16.mxu0 0
    %101 = vmatpush2.bf16.msra.mxu0 0
    %102 = vmatprep.subr.bf16.mxu0 0
    %103 = vmatpush2.bf16.msra.mxu0 0
    %104 = vmatprep.subr.bf16.mxu0 0
    %105 = vmatpush2.bf16.msra.mxu0 0
    %106 = vmatprep.mubr.bf16.mxu0 0
    %107 = vmatmul.mubr.bf16.gmra.mxu0 %v72
    %v108 = vpop.f32.mrf.mxu0
    %v109 = vadd.f32 %v56, %v108
    %v110 = vpop.f32.mrf.mxu0
    %v111 = vpop.f32.mrf.mxu0
    %v112 = vadd.f32 %v56, %v111
    %v113 = vpop.f32.mrf.mxu0
    %114 = vdwg.mxu0
    %115 = vst [vmem:[#allocation7] sm:$0xff] %v109
    %116 = vst [vmem:[#allocation7 + $0x8] sm:$0xff] %v112
    // Predicated region
    $region22: #{tpu_custom_call.1} parent=1 // pred_check
      _
    $region23: #{tpu_custom_call.1} parent=1 // pred_check_branch
      %118 = sbr.rel (0) target = $region25
    $region24: #{tpu_custom_call.1} parent=1 // pred_region
      %s120 = ssub.s32 256, 256
      %121 = vsyncadd [#allocation4], %s120
      %s122 = sshll.u32 [#allocation7], 4
      %s123 = int_to_ptr.vmem [resolvable:$true] %s122
      %128 = dma.vmem_to_hbm [thread:$0]  %s123, 256, %s3, [#allocation4], 128, 128, 8
    $region25: #{tpu_custom_call.1} parent=1 // pred_fallthru
      _
    // Predicated region
    $region26: #{tpu_custom_call.1} parent=1 // pred_check
      _
    $region27: #{tpu_custom_call.1} parent=1 // pred_check_branch
      %130 = sbr.rel (0) target = $region29
    $region28: #{tpu_custom_call.1} parent=1 // pred_region
      %131 = dma.done [#allocation4], 256
    $region29: #{tpu_custom_call.1} parent=1 // pred_fallthru
      _
    %132 = vsyncpa [#allocation3], 1
    %133 = vsyncpa [#allocation6], 1
    %134 = vsyncpa [#allocation4], 1

</llo_original>
